<compile_context>
chip_gen: v7x
topology: tpu7x:2x2x1
jax: 0.10.0
libtpu: 0.0.40
codegen_flags: <defaults>
</compile_context>

<pallas_src>
import jax
import jax.numpy as jnp
from jax.experimental import pallas as pl
from jax.experimental.pallas import tpu as pltpu


_H1, _H2, _H3 = 512, 256, 128
_OUT_PAD = 128   # lane-dense padded classifier width


def _iris_kernel(x_ref,
                 w1_ref, t1_ref,
                 w2_ref, t2_ref,
                 w3_ref, t3_ref,
                 w4_ref, b4_ref,
                 o_ref):
    # --- fc1 (+ folded bn1) -> relu.  K = input_size (4): use VPU FMAs, not MXU.
    x = x_ref[...]                       # (tile_b, K) f32
    w1 = w1_ref[...]                     # (K, 512)    f32 (BN scale folded in)
    k_in = x.shape[1]
    h = x[:, 0:1] * w1[0:1, :]
    for k in range(1, k_in):             # static unroll; K is tiny
        h = h + x[:, k:k + 1] * w1[k:k + 1, :]
    h = jnp.maximum(h + t1_ref[...], 0.0)

    # --- fc2 (+ folded bn2) -> sigmoid.  bf16 MXU operands, f32 accumulation.
    h = jnp.dot(h.astype(w2_ref.dtype), w2_ref[...],
                preferred_element_type=jnp.float32) + t2_ref[...]
    h = jax.nn.sigmoid(h)

    # --- fc3 (+ folded bn3) -> tanh.
    h = jnp.dot(h.astype(w3_ref.dtype), w3_ref[...],
                preferred_element_type=jnp.float32) + t3_ref[...]
    h = jnp.tanh(h)

    # --- fc4, padded to 128 lanes for a lane-dense store.
    out = jnp.dot(h.astype(w4_ref.dtype), w4_ref[...],
                  preferred_element_type=jnp.float32) + b4_ref[...]
    o_ref[...] = out.astype(o_ref.dtype)


def _round_up(n, m):
    return ((n + m - 1) // m) * m


def iris_network_forward(x, params, num_classes, *, tile_b=None):
    """Eval-mode forward pass. `params` comes from make_params()."""
    B, F = x.shape
    if tile_b is None:
        # 256-row tiles fill the 256-wide MXU on v6e/v7x; intermediates stay
        # well under the v7x 32 MiB scoped-VMEM default (h1 tile = 0.5 MiB f32).
        tile_b = 256 if B >= 256 else _round_up(B, 8)
    b_pad = _round_up(max(B, tile_b), tile_b)
    if b_pad != B:
        x = jnp.pad(x, ((0, b_pad - B), (0, 0)))
    grid = (b_pad // tile_b,)

    def const_spec(shape):
        # Constant block index -> DMA'd once, resident in VMEM across the grid.
        return pl.BlockSpec(shape, lambda i: (0, 0))

    in_specs = [
        pl.BlockSpec((tile_b, F), lambda i: (i, 0)),        # x: tiled over batch
        const_spec(params["w1"].shape), const_spec(params["t1"].shape),
        const_spec(params["w2"].shape), const_spec(params["t2"].shape),
        const_spec(params["w3"].shape), const_spec(params["t3"].shape),
        const_spec(params["w4"].shape), const_spec(params["b4"].shape),
    ]
    out_specs = pl.BlockSpec((tile_b, _OUT_PAD), lambda i: (i, 0))

    flops = 2 * b_pad * (F * _H1 + _H1 * _H2 + _H2 * _H3 + _H3 * _OUT_PAD)
    bytes_accessed = (
        int(x.size) * x.dtype.itemsize
        + sum(int(params[k].size) * params[k].dtype.itemsize
              for k in ("w1", "t1", "w2", "t2", "w3", "t3", "w4", "b4"))
        + b_pad * _OUT_PAD * 4)
    cost = pl.CostEstimate(flops=flops,
                           transcendentals=b_pad * (_H2 + _H3),
                           bytes_accessed=bytes_accessed)

    out_padded = pl.pallas_call(
        _iris_kernel,
        out_shape=jax.ShapeDtypeStruct((b_pad, _OUT_PAD), jnp.float32),
        grid=grid,
        in_specs=in_specs,
        out_specs=out_specs,
        compiler_params=pltpu.CompilerParams(
            dimension_semantics=("parallel",)),
        cost_estimate=cost,
    )(x,
      params["w1"], params["t1"],
      params["w2"], params["t2"],
      params["w3"], params["t3"],
      params["w4"], params["b4"])
    return out_padded[:B, :num_classes]


# ---------------------------------------------------------------------------
# Parameter construction (PyTorch-style init, BN folded, classifier padded).
# ---------------------------------------------------------------------------

def _linear_init(key, fan_in, fan_out):
    # PyTorch nn.Linear default init: U(-1/sqrt(fan_in), 1/sqrt(fan_in)).
    kw, kb = jax.random.split(key)
    bound = 1.0 / jnp.sqrt(jnp.float32(fan_in))
    w = jax.random.uniform(kw, (fan_in, fan_out), jnp.float32, -bound, bound)
    b = jax.random.uniform(kb, (1, fan_out), jnp.float32, -bound, bound)
    return w, b


def _bn_init(key, feats):
    # Deterministic, non-trivial BN (eval) parameters.
    k1, k2, k3, k4 = jax.random.split(key, 4)
    gamma = 1.0 + 0.1 * jax.random.normal(k1, (1, feats), jnp.float32)
    beta = 0.1 * jax.random.normal(k2, (1, feats), jnp.float32)
    running_mean = 0.1 * jax.random.normal(k3, (1, feats), jnp.float32)
    running_var = 1.0 + 0.1 * jax.random.uniform(k4, (1, feats), jnp.float32)
    return gamma, beta, running_mean, running_var


def _fold_bn(bias, gamma, beta, mean, var, eps=1e-5):
    # ((x@W + b) - mean)/sqrt(var+eps)*gamma + beta == x@(W*s) + t
    s = gamma / jnp.sqrt(var + eps)
    t = (bias - mean) * s + beta
    return s, t


def make_params(key, input_size, num_classes, *, mxu_dtype=jnp.bfloat16):
    keys = jax.random.split(key, 7)
    w1, b1 = _linear_init(keys[0], input_size, _H1)
    w2, b2 = _linear_init(keys[1], _H1, _H2)
    w3, b3 = _linear_init(keys[2], _H2, _H3)
    w4, b4 = _linear_init(keys[3], _H3, num_classes)
    g1, be1, m1, v1 = _bn_init(keys[4], _H1)
    g2, be2, m2, v2 = _bn_init(keys[5], _H2)
    g3, be3, m3, v3 = _bn_init(keys[6], _H3)
    s1, t1 = _fold_bn(b1, g1, be1, m1, v1)
    s2, t2 = _fold_bn(b2, g2, be2, m2, v2)
    s3, t3 = _fold_bn(b3, g3, be3, m3, v3)

    # Fold BN scale into the weight columns; drop s1/s2/s3 entirely.
    w1f = (w1 * s1).astype(jnp.float32)           # fc1 runs on the VPU in f32
    w2f = (w2 * s2).astype(mxu_dtype)             # MXU operand dtype
    w3f = (w3 * s3).astype(mxu_dtype)

    # Zero-pad the classifier to a lane-dense 128-wide output.
    w4p = jnp.zeros((_H3, _OUT_PAD), jnp.float32).at[:, :num_classes].set(w4)
    b4p = jnp.zeros((1, _OUT_PAD), jnp.float32).at[:, :num_classes].set(b4)

    return {
        "w1": w1f, "t1": t1,
        "w2": w2f, "t2": t2,
        "w3": w3f, "t3": t3,
        "w4": w4p.astype(mxu_dtype), "b4": b4p,
    }


def _reference_forward(x, params, num_classes):
    # Pure-JAX reference doing the same folded / mixed-precision math.
    h = jnp.maximum(x @ params["w1"] + params["t1"], 0.0)
    h = jax.nn.sigmoid(
        jnp.dot(h.astype(params["w2"].dtype), params["w2"],
                preferred_element_type=jnp.float32) + params["t2"])
    h = jnp.tanh(
        jnp.dot(h.astype(params["w3"].dtype), params["w3"],
                preferred_element_type=jnp.float32) + params["t3"])
    out = jnp.dot(h.astype(params["w4"].dtype), params["w4"],
                  preferred_element_type=jnp.float32) + params["b4"]
    return out[:, :num_classes]


if __name__ == "__main__":
    input_size = 4      # iris has 4 features
    num_classes = 3     # iris has 3 classes
    batch = 64

    key = jax.random.PRNGKey(0)
    kx, kp = jax.random.split(key)
    x = jax.random.normal(kx, (batch, input_size), jnp.float32)
    params = make_params(kp, input_size, num_classes)

    # tile_b=16 so the small demo still exercises a multi-step batch grid
    # (production default is tile_b=256).
    out = iris_network_forward(x, params, num_classes, tile_b=16)
    out = jax.block_until_ready(out)

    ref = _reference_forward(x, params, num_classes)
    assert out.shape == (batch, num_classes)
    # bf16 MXU operands: allow bf16-level tolerance.
    assert jnp.allclose(out, ref, atol=1e-2, rtol=1e-2), (
        float(jnp.max(jnp.abs(out - ref))))

    print("KERNEL_OK")
</pallas_src>

<mosaic_0001>
module attributes {stable_mosaic.version = 11 : i64} {
  func.func @_iris_kernel(%arg0: i32, %arg1: memref<16x4xf32, #tpu.memory_space<vmem>>, %arg2: memref<4x512xf32, #tpu.memory_space<vmem>>, %arg3: memref<1x512xf32, #tpu.memory_space<vmem>>, %arg4: memref<512x256xbf16, #tpu.memory_space<vmem>>, %arg5: memref<1x256xf32, #tpu.memory_space<vmem>>, %arg6: memref<256x128xbf16, #tpu.memory_space<vmem>>, %arg7: memref<1x128xf32, #tpu.memory_space<vmem>>, %arg8: memref<128x128xbf16, #tpu.memory_space<vmem>>, %arg9: memref<1x128xf32, #tpu.memory_space<vmem>>, %arg10: memref<16x128xf32, #tpu.memory_space<vmem>>) attributes {dimension_semantics = [#tpu.dimension_semantics<parallel>], iteration_bounds = array<i64: 4>, scalar_prefetch = 0 : i64, scratch_operands = 0 : i64, tpu.core_type = #tpu.core_type<tc>, window_params = [{transform_indices = @transform_0, window_bounds = array<i64: 16, 4>}, {pipeline_mode = #tpu.pipeline_mode<synchronous>, transform_indices = @transform_1, window_bounds = array<i64: 4, 512>}, {pipeline_mode = #tpu.pipeline_mode<synchronous>, transform_indices = @transform_2, window_bounds = array<i64: 1, 512>}, {pipeline_mode = #tpu.pipeline_mode<synchronous>, transform_indices = @transform_3, window_bounds = array<i64: 512, 256>}, {pipeline_mode = #tpu.pipeline_mode<synchronous>, transform_indices = @transform_4, window_bounds = array<i64: 1, 256>}, {pipeline_mode = #tpu.pipeline_mode<synchronous>, transform_indices = @transform_5, window_bounds = array<i64: 256, 128>}, {pipeline_mode = #tpu.pipeline_mode<synchronous>, transform_indices = @transform_6, window_bounds = array<i64: 1, 128>}, {pipeline_mode = #tpu.pipeline_mode<synchronous>, transform_indices = @transform_7, window_bounds = array<i64: 128, 128>}, {pipeline_mode = #tpu.pipeline_mode<synchronous>, transform_indices = @transform_8, window_bounds = array<i64: 1, 128>}, {transform_indices = @transform_9, window_bounds = array<i64: 16, 128>}]} {
    %c0 = arith.constant 0 : index
    %c0_0 = arith.constant 0 : index
    %0 = vector.load %arg1[%c0, %c0_0] : memref<16x4xf32, #tpu.memory_space<vmem>>, vector<16x4xf32>
    %c0_1 = arith.constant 0 : index
    %c0_2 = arith.constant 0 : index
    %1 = vector.load %arg2[%c0_1, %c0_2] : memref<4x512xf32, #tpu.memory_space<vmem>>, vector<4x512xf32>
    %2 = vector.extract_strided_slice %0 {offsets = [0, 0], sizes = [16, 1], strides = [1, 1]} : vector<16x4xf32> to vector<16x1xf32>
    %3 = vector.extract_strided_slice %1 {offsets = [0, 0], sizes = [1, 512], strides = [1, 1]} : vector<4x512xf32> to vector<1x512xf32>
    %4 = vector.broadcast %2 : vector<16x1xf32> to vector<16x512xf32>
    %5 = vector.broadcast %3 : vector<1x512xf32> to vector<16x512xf32>
    %6 = arith.mulf %4, %5 : vector<16x512xf32>
    %7 = vector.extract_strided_slice %0 {offsets = [0, 1], sizes = [16, 1], strides = [1, 1]} : vector<16x4xf32> to vector<16x1xf32>
    %8 = vector.extract_strided_slice %1 {offsets = [1, 0], sizes = [1, 512], strides = [1, 1]} : vector<4x512xf32> to vector<1x512xf32>
    %9 = vector.broadcast %7 : vector<16x1xf32> to vector<16x512xf32>
    %10 = vector.broadcast %8 : vector<1x512xf32> to vector<16x512xf32>
    %11 = arith.mulf %9, %10 : vector<16x512xf32>
    %12 = arith.addf %6, %11 : vector<16x512xf32>
    %13 = vector.extract_strided_slice %0 {offsets = [0, 2], sizes = [16, 1], strides = [1, 1]} : vector<16x4xf32> to vector<16x1xf32>
    %14 = vector.extract_strided_slice %1 {offsets = [2, 0], sizes = [1, 512], strides = [1, 1]} : vector<4x512xf32> to vector<1x512xf32>
    %15 = vector.broadcast %13 : vector<16x1xf32> to vector<16x512xf32>
    %16 = vector.broadcast %14 : vector<1x512xf32> to vector<16x512xf32>
    %17 = arith.mulf %15, %16 : vector<16x512xf32>
    %18 = arith.addf %12, %17 : vector<16x512xf32>
    %19 = vector.extract_strided_slice %0 {offsets = [0, 3], sizes = [16, 1], strides = [1, 1]} : vector<16x4xf32> to vector<16x1xf32>
    %20 = vector.extract_strided_slice %1 {offsets = [3, 0], sizes = [1, 512], strides = [1, 1]} : vector<4x512xf32> to vector<1x512xf32>
    %21 = vector.broadcast %19 : vector<16x1xf32> to vector<16x512xf32>
    %22 = vector.broadcast %20 : vector<1x512xf32> to vector<16x512xf32>
    %23 = arith.mulf %21, %22 : vector<16x512xf32>
    %24 = arith.addf %18, %23 : vector<16x512xf32>
    %c0_3 = arith.constant 0 : index
    %c0_4 = arith.constant 0 : index
    %25 = vector.load %arg3[%c0_3, %c0_4] : memref<1x512xf32, #tpu.memory_space<vmem>>, vector<1x512xf32>
    %26 = vector.broadcast %25 : vector<1x512xf32> to vector<16x512xf32>
    %27 = arith.addf %24, %26 : vector<16x512xf32>
    %cst = arith.constant 0.000000e+00 : f32
    %28 = vector.broadcast %cst : f32 to vector<16x512xf32>
    %29 = arith.maximumf %27, %28 : vector<16x512xf32>
    %30 = arith.truncf %29 : vector<16x512xf32> to vector<16x512xbf16>
    %c0_5 = arith.constant 0 : index
    %c0_6 = arith.constant 0 : index
    %31 = vector.load %arg4[%c0_5, %c0_6] : memref<512x256xbf16, #tpu.memory_space<vmem>>, vector<512x256xbf16>
    %cst_7 = arith.constant dense<0.000000e+00> : vector<16x256xf32>
    %32 = tpu.matmul %30, %31, %cst_7 {dimension_numbers = #tpu.dot_dimension_numbers<[1], [0], [0], [1], [0, 0, 1, 1], [], []>} : vector<16x512xbf16>, vector<512x256xbf16>, vector<16x256xf32> -> vector<16x256xf32>
    %c0_8 = arith.constant 0 : index
    %c0_9 = arith.constant 0 : index
    %33 = vector.load %arg5[%c0_8, %c0_9] : memref<1x256xf32, #tpu.memory_space<vmem>>, vector<1x256xf32>
    %34 = vector.broadcast %33 : vector<1x256xf32> to vector<16x256xf32>
    %35 = arith.addf %32, %34 : vector<16x256xf32>
    %36 = arith.negf %35 : vector<16x256xf32>
    %37 = math.exp %36 : vector<16x256xf32>
    %cst_10 = arith.constant 1.000000e+00 : f32
    %38 = vector.broadcast %cst_10 : f32 to vector<16x256xf32>
    %39 = arith.addf %38, %37 : vector<16x256xf32>
    %40 = arith.divf %38, %39 : vector<16x256xf32>
    %41 = arith.truncf %40 : vector<16x256xf32> to vector<16x256xbf16>
    %c0_11 = arith.constant 0 : index
    %c0_12 = arith.constant 0 : index
    %42 = vector.load %arg6[%c0_11, %c0_12] : memref<256x128xbf16, #tpu.memory_space<vmem>>, vector<256x128xbf16>
    %cst_13 = arith.constant dense<0.000000e+00> : vector<16x128xf32>
    %43 = tpu.matmul %41, %42, %cst_13 {dimension_numbers = #tpu.dot_dimension_numbers<[1], [0], [0], [1], [0, 0, 1, 1], [], []>} : vector<16x256xbf16>, vector<256x128xbf16>, vector<16x128xf32> -> vector<16x128xf32>
    %c0_14 = arith.constant 0 : index
    %c0_15 = arith.constant 0 : index
    %44 = vector.load %arg7[%c0_14, %c0_15] : memref<1x128xf32, #tpu.memory_space<vmem>>, vector<1x128xf32>
    %45 = vector.broadcast %44 : vector<1x128xf32> to vector<16x128xf32>
    %46 = arith.addf %43, %45 : vector<16x128xf32>
    %47 = math.tanh %46 : vector<16x128xf32>
    %48 = arith.truncf %47 : vector<16x128xf32> to vector<16x128xbf16>
    %c0_16 = arith.constant 0 : index
    %c0_17 = arith.constant 0 : index
    %49 = vector.load %arg8[%c0_16, %c0_17] : memref<128x128xbf16, #tpu.memory_space<vmem>>, vector<128x128xbf16>
    %cst_18 = arith.constant dense<0.000000e+00> : vector<16x128xf32>
    %50 = tpu.matmul %48, %49, %cst_18 {dimension_numbers = #tpu.dot_dimension_numbers<[1], [0], [0], [1], [0, 0, 1, 1], [], []>} : vector<16x128xbf16>, vector<128x128xbf16>, vector<16x128xf32> -> vector<16x128xf32>
    %c0_19 = arith.constant 0 : index
    %c0_20 = arith.constant 0 : index
    %51 = vector.load %arg9[%c0_19, %c0_20] : memref<1x128xf32, #tpu.memory_space<vmem>>, vector<1x128xf32>
    %52 = vector.broadcast %51 : vector<1x128xf32> to vector<16x128xf32>
    %53 = arith.addf %50, %52 : vector<16x128xf32>
    %c0_21 = arith.constant 0 : index
    %c0_22 = arith.constant 0 : index
    %54 = vector.load %arg10[%c0_21, %c0_22] : memref<16x128xf32, #tpu.memory_space<vmem>>, vector<16x128xf32>
    tpu.vector_store %arg10[%c0_21, %c0_22], %53 {strides = array<i32>} : memref<16x128xf32, #tpu.memory_space<vmem>>, vector<16x128xf32>,
    return
  }
  func.func @transform_0(%arg0: i32) -> (i32, i32) {
    %c0_i32 = arith.constant 0 : i32
    %c0_i32_0 = arith.constant 0 : i32
    return %arg0, %c0_i32 : i32, i32
  }
  func.func @transform_1(%arg0: i32) -> (i32, i32) {
    %c0_i32 = arith.constant 0 : i32
    %c0_i32_0 = arith.constant 0 : i32
    %c0_i32_1 = arith.constant 0 : i32
    return %c0_i32, %c0_i32_0 : i32, i32
  }
  func.func @transform_2(%arg0: i32) -> (i32, i32) {
    %c0_i32 = arith.constant 0 : i32
    %c0_i32_0 = arith.constant 0 : i32
    %c0_i32_1 = arith.constant 0 : i32
    return %c0_i32, %c0_i32_0 : i32, i32
  }
  func.func @transform_3(%arg0: i32) -> (i32, i32) {
    %c0_i32 = arith.constant 0 : i32
    %c0_i32_0 = arith.constant 0 : i32
    %c0_i32_1 = arith.constant 0 : i32
    return %c0_i32, %c0_i32_0 : i32, i32
  }
  func.func @transform_4(%arg0: i32) -> (i32, i32) {
    %c0_i32 = arith.constant 0 : i32
    %c0_i32_0 = arith.constant 0 : i32
    %c0_i32_1 = arith.constant 0 : i32
    return %c0_i32, %c0_i32_0 : i32, i32
  }
  func.func @transform_5(%arg0: i32) -> (i32, i32) {
    %c0_i32 = arith.constant 0 : i32
    %c0_i32_0 = arith.constant 0 : i32
    %c0_i32_1 = arith.constant 0 : i32
    return %c0_i32, %c0_i32_0 : i32, i32
  }
  func.func @transform_6(%arg0: i32) -> (i32, i32) {
    %c0_i32 = arith.constant 0 : i32
    %c0_i32_0 = arith.constant 0 : i32
    %c0_i32_1 = arith.constant 0 : i32
    return %c0_i32, %c0_i32_0 : i32, i32
  }
  func.func @transform_7(%arg0: i32) -> (i32, i32) {
    %c0_i32 = arith.constant 0 : i32
    %c0_i32_0 = arith.constant 0 : i32
    %c0_i32_1 = arith.constant 0 : i32
    return %c0_i32, %c0_i32_0 : i32, i32
  }
  func.func @transform_8(%arg0: i32) -> (i32, i32) {
    %c0_i32 = arith.constant 0 : i32
    %c0_i32_0 = arith.constant 0 : i32
    %c0_i32_1 = arith.constant 0 : i32
    return %c0_i32, %c0_i32_0 : i32, i32
  }
  func.func @transform_9(%arg0: i32) -> (i32, i32) {
    %c0_i32 = arith.constant 0 : i32
    %c0_i32_0 = arith.constant 0 : i32
    return %arg0, %c0_i32 : i32, i32
  }
}

</mosaic_0001>

<llo_original>
// kernel: tpu_custom_call.1
$region0: #{tpu_custom_call.1}
  #allocation0 [shape = 'u32[]', space=smem, size = 0x4, offset = 0x4, fixed_abs, tag = 'smem constant byte address 0x4 - core index']
  #allocation1 [shape = 'u32[144,128]{1,0:T(1,128)}', space=vmem, size = 0x12000, scoped, tag = 'internal scratch']
  %s0 = inlined_call_operand.vmem [shape: f32[64,4], index: 0, kind: input, shape index: {}]
  %s1 = inlined_call_operand.vmem [shape: f32[4,512], index: 1, kind: input, shape index: {}]
  %s2 = inlined_call_operand.vmem [shape: f32[1,512], index: 2, kind: input, shape index: {}]
  %s3 = inlined_call_operand.hbm [shape: bf16[512,256], index: 3, kind: input, shape index: {}]
  %s4 = inlined_call_operand.vmem [shape: f32[1,256], index: 4, kind: input, shape index: {}]
  %s5 = inlined_call_operand.hbm [shape: bf16[256,128], index: 5, kind: input, shape index: {}]
  %s6 = inlined_call_operand.vmem [shape: f32[1,128], index: 6, kind: input, shape index: {}]
  %s7 = inlined_call_operand.vmem [shape: bf16[128,128], index: 7, kind: input, shape index: {}]
  %s8 = inlined_call_operand.vmem [shape: f32[1,128], index: 8, kind: input, shape index: {}]
  %s9 = inlined_call_operand.hbm [shape: f32[64,128], index: 9, kind: output, shape index: {}]
  %s10 = sld [smem:[#allocation0]]
  $region77: #{tpu_custom_call.1} parent=0
    _
  %s12 = ssub.s32 1, %s10
  %s13 = scalar_select 0, %s12, %s10
  $region1: #{tpu_custom_call.1} parent=0
    #allocation2 [shape = 'u8[262144]{0}', space=vmem, size = 0x40000, scoped, tag = 'input window, operand 3, single buffered']
    #allocation3 [shape = 's32[2]{0}', space=sflag, size = 0x8, scoped, tag = 'scoped memory for tpu_custom_call.1']
    #allocation4 [shape = 's32[2]{0}', space=sflag, size = 0x8, scoped, tag = 'scoped memory for tpu_custom_call.1']
    #allocation5 [shape = 'u8[65536]{0}', space=vmem, size = 0x10000, scoped, tag = 'input window, operand 5, single buffered']
    #allocation6 [shape = 's32[1]{0}', space=sflag, size = 0x4, scoped, tag = 'scoped memory for tpu_custom_call.1']
    #allocation7 [shape = 'u8[16384]{0}', space=vmem, size = 0x4000, scoped, tag = 'output window, operand 0']
    %14 = vsyncpa [#allocation3], 0
    %15 = vsyncpa [#allocation6], 0
    %16 = vsyncpa [#allocation4], 0
    %s17 = scalar_lea.sflag [#allocation4], 1
    %18 = vsyncpa %s17, 0
    loop: start=0, step=1, limit=6
    $region2: #{tpu_custom_call.1} parent=1 // loop_pre_header
      _
    $region3: #{tpu_custom_call.1} parent=1 // loop_header
      %s20 = sphi 0, %s24
      %p21 = scmp.ge.s32.totalorder %s20, 6
      %s30 = sphi 0, %s32
      %s33 = sphi 0, %s30
      %s34 = sphi 0, %s33
      %s50 = sphi 0, %s34
      %s54 = sphi 0, %s54
      %s56 = sphi 0, %s54
      %s57 = sphi 0, %s56
      %s71 = sphi 0, %s57
      %s75 = sphi 0, %s75
      %s77 = sphi 0, %s75
      %s78 = sphi 0, %s77
      %s92 = sphi 0, %s78
      %s96 = sphi 0, %s96
      %s98 = sphi 0, %s96
      %s99 = sphi 0, %s98
      %s113 = sphi 0, %s99
      %s117 = sphi 0, %s117
      %s119 = sphi 0, %s117
      %s120 = sphi 0, %s119
      %s134 = sphi 0, %s120
      %s138 = sphi 0, %s138
      %s140 = sphi 0, %s138
      %s141 = sphi 0, %s140
      %s155 = sphi 0, %s141
      %s159 = sphi 0, %s159
      %s161 = sphi 0, %s159
      %s162 = sphi 0, %s161
      %s176 = sphi 0, %s162
      %s180 = sphi 0, %s180
      %s182 = sphi 0, %s180
      %s183 = sphi 0, %s182
      %s197 = sphi 0, %s183
      %s201 = sphi 0, %s201
      %s203 = sphi 0, %s201
      %s204 = sphi 0, %s203
      %s218 = sphi 0, %s204
      %s224 = sphi 0, %s226
      %s227 = sphi 0, %s224
      %s228 = sphi 0, %s227
      %s244 = sphi 0, %s228
    $region4: #{tpu_custom_call.1} parent=1 // loop_header_branch
      %23 = sbr.rel (%p21) target = $region8
    $region5: #{tpu_custom_call.1} parent=1 // loop_body
      %s25 = ssub.s32 %s20, 1
      %s26 = ssub.s32 %s20, 2
      %s27 = sadd.s32 %s20, 1
      %s28 = ssub.s32 %s20, %s27
      %p29 = scmp.eq.s32.totalorder %s28, 0
      %s31 = sadd.s32 %s30, 1
      %s32 = scalar_select %p29, %s30, %s31
      %p35 = pneg %p29
      %p36 = scmp.eq.s32.totalorder %s20, 3
      %p37 = por %p35, %p36
      %p38 = scmp.ne.s32.totalorder %s30, %s33
      %p39 = scmp.eq.s32.totalorder %s20, 0
      %p40 = por %p38, %p39
      %p41 = scmp.ne.s32.totalorder %s30, %s33
      %p42 = scmp.eq.s32.totalorder %s25, 3
      %p43 = por %p41, %p42
      %p44 = scmp.ne.s32.totalorder %s33, %s34
      %p45 = scmp.eq.s32.totalorder %s25, 0
      %p46 = por %p44, %p45
      %p47 = scmp.ne.s32.totalorder %s33, %s34
      %p48 = scmp.eq.s32.totalorder %s26, 3
      %p49 = por %p47, %p48
      %p51 = scmp.ne.s32.totalorder %s34, %s50
      %p52 = scmp.eq.s32.totalorder %s26, 0
      %p53 = por %p51, %p52
      %s55 = sadd.s32 %s54, 1
      %p58 = scmp.eq.s32.totalorder %s20, 3
      %p59 = scmp.ne.s32.totalorder %s54, %s56
      %p60 = scmp.eq.s32.totalorder %s20, 0
      %p61 = por %p59, %p60
      %p62 = scmp.ne.s32.totalorder %s54, %s56
      %p63 = scmp.eq.s32.totalorder %s25, 3
      %p64 = por %p62, %p63
      %p65 = scmp.ne.s32.totalorder %s56, %s57
      %p66 = scmp.eq.s32.totalorder %s25, 0
      %p67 = por %p65, %p66
      %p68 = scmp.ne.s32.totalorder %s56, %s57
      %p69 = scmp.eq.s32.totalorder %s26, 3
      %p70 = por %p68, %p69
      %p72 = scmp.ne.s32.totalorder %s57, %s71
      %p73 = scmp.eq.s32.totalorder %s26, 0
      %p74 = por %p72, %p73
      %s76 = sadd.s32 %s75, 1
      %p79 = scmp.eq.s32.totalorder %s20, 3
      %p80 = scmp.ne.s32.totalorder %s75, %s77
      %p81 = scmp.eq.s32.totalorder %s20, 0
      %p82 = por %p80, %p81
      %p83 = scmp.ne.s32.totalorder %s75, %s77
      %p84 = scmp.eq.s32.totalorder %s25, 3
      %p85 = por %p83, %p84
      %p86 = scmp.ne.s32.totalorder %s77, %s78
      %p87 = scmp.eq.s32.totalorder %s25, 0
      %p88 = por %p86, %p87
      %p89 = scmp.ne.s32.totalorder %s77, %s78
      %p90 = scmp.eq.s32.totalorder %s26, 3
      %p91 = por %p89, %p90
      %p93 = scmp.ne.s32.totalorder %s78, %s92
      %p94 = scmp.eq.s32.totalorder %s26, 0
      %p95 = por %p93, %p94
      %s97 = sadd.s32 %s96, 1
      %p100 = scmp.eq.s32.totalorder %s20, 3
      %p101 = scmp.ne.s32.totalorder %s96, %s98
      %p102 = scmp.eq.s32.totalorder %s20, 0
      %p103 = por %p101, %p102
      %p104 = scmp.ne.s32.totalorder %s96, %s98
      %p105 = scmp.eq.s32.totalorder %s25, 3
      %p106 = por %p104, %p105
      %p107 = scmp.ne.s32.totalorder %s98, %s99
      %p108 = scmp.eq.s32.totalorder %s25, 0
      %p109 = por %p107, %p108
      %p110 = scmp.ne.s32.totalorder %s98, %s99
      %p111 = scmp.eq.s32.totalorder %s26, 3
      %p112 = por %p110, %p111
      %p114 = scmp.ne.s32.totalorder %s99, %s113
      %p115 = scmp.eq.s32.totalorder %s26, 0
      %p116 = por %p114, %p115
      %s118 = sadd.s32 %s117, 1
      %p121 = scmp.eq.s32.totalorder %s20, 3
      %p122 = scmp.ne.s32.totalorder %s117, %s119
      %p123 = scmp.eq.s32.totalorder %s20, 0
      %p124 = por %p122, %p123
      %p125 = scmp.ne.s32.totalorder %s117, %s119
      %p126 = scmp.eq.s32.totalorder %s25, 3
      %p127 = por %p125, %p126
      %p128 = scmp.ne.s32.totalorder %s119, %s120
      %p129 = scmp.eq.s32.totalorder %s25, 0
      %p130 = por %p128, %p129
      %p131 = scmp.ne.s32.totalorder %s119, %s120
      %p132 = scmp.eq.s32.totalorder %s26, 3
      %p133 = por %p131, %p132
      %p135 = scmp.ne.s32.totalorder %s120, %s134
      %p136 = scmp.eq.s32.totalorder %s26, 0
      %p137 = por %p135, %p136
      %s139 = sadd.s32 %s138, 1
      %p142 = scmp.eq.s32.totalorder %s20, 3
      %p143 = scmp.ne.s32.totalorder %s138, %s140
      %p144 = scmp.eq.s32.totalorder %s20, 0
      %p145 = por %p143, %p144
      %p146 = scmp.ne.s32.totalorder %s138, %s140
      %p147 = scmp.eq.s32.totalorder %s25, 3
      %p148 = por %p146, %p147
      %p149 = scmp.ne.s32.totalorder %s140, %s141
      %p150 = scmp.eq.s32.totalorder %s25, 0
      %p151 = por %p149, %p150
      %p152 = scmp.ne.s32.totalorder %s140, %s141
      %p153 = scmp.eq.s32.totalorder %s26, 3
      %p154 = por %p152, %p153
      %p156 = scmp.ne.s32.totalorder %s141, %s155
      %p157 = scmp.eq.s32.totalorder %s26, 0
      %p158 = por %p156, %p157
      %s160 = sadd.s32 %s159, 1
      %p163 = scmp.eq.s32.totalorder %s20, 3
      %p164 = scmp.ne.s32.totalorder %s159, %s161
      %p165 = scmp.eq.s32.totalorder %s20, 0
      %p166 = por %p164, %p165
      %p167 = scmp.ne.s32.totalorder %s159, %s161
      %p168 = scmp.eq.s32.totalorder %s25, 3
      %p169 = por %p167, %p168
      %p170 = scmp.ne.s32.totalorder %s161, %s162
      %p171 = scmp.eq.s32.totalorder %s25, 0
      %p172 = por %p170, %p171
      %p173 = scmp.ne.s32.totalorder %s161, %s162
      %p174 = scmp.eq.s32.totalorder %s26, 3
      %p175 = por %p173, %p174
      %p177 = scmp.ne.s32.totalorder %s162, %s176
      %p178 = scmp.eq.s32.totalorder %s26, 0
      %p179 = por %p177, %p178
      %s181 = sadd.s32 %s180, 1
      %p184 = scmp.eq.s32.totalorder %s20, 3
      %p185 = scmp.ne.s32.totalorder %s180, %s182
      %p186 = scmp.eq.s32.totalorder %s20, 0
      %p187 = por %p185, %p186
      %p188 = scmp.ne.s32.totalorder %s180, %s182
      %p189 = scmp.eq.s32.totalorder %s25, 3
      %p190 = por %p188, %p189
      %p191 = scmp.ne.s32.totalorder %s182, %s183
      %p192 = scmp.eq.s32.totalorder %s25, 0
      %p193 = por %p191, %p192
      %p194 = scmp.ne.s32.totalorder %s182, %s183
      %p195 = scmp.eq.s32.totalorder %s26, 3
      %p196 = por %p194, %p195
      %p198 = scmp.ne.s32.totalorder %s183, %s197
      %p199 = scmp.eq.s32.totalorder %s26, 0
      %p200 = por %p198, %p199
      %s202 = sadd.s32 %s201, 1
      %p205 = scmp.eq.s32.totalorder %s20, 3
      %p206 = scmp.ne.s32.totalorder %s201, %s203
      %p207 = scmp.eq.s32.totalorder %s20, 0
      %p208 = por %p206, %p207
      %p209 = scmp.ne.s32.totalorder %s201, %s203
      %p210 = scmp.eq.s32.totalorder %s25, 3
      %p211 = por %p209, %p210
      %p212 = scmp.ne.s32.totalorder %s203, %s204
      %p213 = scmp.eq.s32.totalorder %s25, 0
      %p214 = por %p212, %p213
      %p215 = scmp.ne.s32.totalorder %s203, %s204
      %p216 = scmp.eq.s32.totalorder %s26, 3
      %p217 = por %p215, %p216
      %p219 = scmp.ne.s32.totalorder %s204, %s218
      %p220 = scmp.eq.s32.totalorder %s26, 0
      %p221 = por %p219, %p220
      %s222 = ssub.s32 %s20, %s27
      %p223 = scmp.eq.s32.totalorder %s222, 0
      %s225 = sadd.s32 %s224, 1
      %s226 = scalar_select %p223, %s224, %s225
      %p229 = pneg %p223
      %p230 = scmp.eq.s32.totalorder %s20, 3
      %p231 = por %p229, %p230
      %p232 = scmp.ne.s32.totalorder %s224, %s227
      %p233 = scmp.eq.s32.totalorder %s20, 0
      %p234 = por %p232, %p233
      %p235 = scmp.ne.s32.totalorder %s224, %s227
      %p236 = scmp.eq.s32.totalorder %s25, 3
      %p237 = por %p235, %p236
      %p238 = scmp.ne.s32.totalorder %s227, %s228
      %p239 = scmp.eq.s32.totalorder %s25, 0
      %p240 = por %p238, %p239
      %p241 = scmp.ne.s32.totalorder %s227, %s228
      %p242 = scmp.eq.s32.totalorder %s26, 3
      %p243 = por %p241, %p242
      %p245 = scmp.ne.s32.totalorder %s228, %s244
      %p246 = scmp.eq.s32.totalorder %s26, 0
      %p247 = por %p245, %p246
      %p248 = scmp.le.s32.totalorder 1, %s20
      %p249 = scmp.lt.s32.totalorder %s20, 5
      %p250 = pnand %p248, %p249
      %p251 = pneg %p250
      // Predicated region
      $region9: #{tpu_custom_call.1} parent=5 // pred_check
        _
      $region10: #{tpu_custom_call.1} parent=5 // pred_check_branch
        %253 = sbr.rel (%p250) target = $region12
      $region11: #{tpu_custom_call.1} parent=5 // pred_region
        %s254 = ssub.s32 %s20, 1
        // Predicated region
        $region13: #{tpu_custom_call.1} parent=11 // pred_check
          %p255 = pneg %p67
        $region14: #{tpu_custom_call.1} parent=11 // pred_check_branch
          %257 = sbr.rel (%p255) target = $region16
        $region15: #{tpu_custom_call.1} parent=11 // pred_region
          _
        $region16: #{tpu_custom_call.1} parent=11 // pred_fallthru
          _
        // Predicated region
        $region17: #{tpu_custom_call.1} parent=11 // pred_check
          %p258 = pneg %p88
        $region18: #{tpu_custom_call.1} parent=11 // pred_check_branch
          %260 = sbr.rel (%p258) target = $region20
        $region19: #{tpu_custom_call.1} parent=11 // pred_region
          _
        $region20: #{tpu_custom_call.1} parent=11 // pred_fallthru
          _
        // Predicated region
        $region21: #{tpu_custom_call.1} parent=11 // pred_check
          %p261 = pneg %p109
        $region22: #{tpu_custom_call.1} parent=11 // pred_check_branch
          %263 = sbr.rel (%p261) target = $region24
        $region23: #{tpu_custom_call.1} parent=11 // pred_region
          %s265 = ssub.s32 8192, 8192
          %266 = vsyncadd [#allocation3], %s265
          %s267 = sshll.u32 [#allocation2], 4
          %s268 = int_to_ptr.vmem [resolvable:$true] %s267
          %273 = dma.hbm_to_vmem [thread:$0]  %s3, 8192, %s268, [#allocation3], 128, 128, 8
        $region24: #{tpu_custom_call.1} parent=11 // pred_fallthru
          _
        // Predicated region
        $region25: #{tpu_custom_call.1} parent=11 // pred_check
          %p274 = pneg %p130
        $region26: #{tpu_custom_call.1} parent=11 // pred_check_branch
          %276 = sbr.rel (%p274) target = $region28
        $region27: #{tpu_custom_call.1} parent=11 // pred_region
          _
        $region28: #{tpu_custom_call.1} parent=11 // pred_fallthru
          _
        // Predicated region
        $region29: #{tpu_custom_call.1} parent=11 // pred_check
          %p277 = pneg %p151
        $region30: #{tpu_custom_call.1} parent=11 // pred_check_branch
          %279 = sbr.rel (%p277) target = $region32
        $region31: #{tpu_custom_call.1} parent=11 // pred_region
          %s281 = ssub.s32 2048, 2048
          %282 = vsyncadd [#allocation6], %s281
          %s283 = sshll.u32 [#allocation5], 4
          %s284 = int_to_ptr.vmem [resolvable:$true] %s283
          %289 = dma.hbm_to_vmem [thread:$0]  %s5, 2048, %s284, [#allocation6], 64, 64, 4
        $region32: #{tpu_custom_call.1} parent=11 // pred_fallthru
          _
        // Predicated region
        $region33: #{tpu_custom_call.1} parent=11 // pred_check
          %p290 = pneg %p172
        $region34: #{tpu_custom_call.1} parent=11 // pred_check_branch
          %292 = sbr.rel (%p290) target = $region36
        $region35: #{tpu_custom_call.1} parent=11 // pred_region
          _
        $region36: #{tpu_custom_call.1} parent=11 // pred_fallthru
          _
        // Predicated region
        $region37: #{tpu_custom_call.1} parent=11 // pred_check
          %p293 = pneg %p193
        $region38: #{tpu_custom_call.1} parent=11 // pred_check_branch
          %295 = sbr.rel (%p293) target = $region40
        $region39: #{tpu_custom_call.1} parent=11 // pred_region
          _
        $region40: #{tpu_custom_call.1} parent=11 // pred_fallthru
          _
        // Predicated region
        $region41: #{tpu_custom_call.1} parent=11 // pred_check
          %p296 = pneg %p214
        $region42: #{tpu_custom_call.1} parent=11 // pred_check_branch
          %298 = sbr.rel (%p296) target = $region44
        $region43: #{tpu_custom_call.1} parent=11 // pred_region
          _
        $region44: #{tpu_custom_call.1} parent=11 // pred_fallthru
          _
      $region12: #{tpu_custom_call.1} parent=5 // pred_fallthru
        _
      %p299 = scmp.lt.s32.totalorder %s20, 4
      // Predicated region
      $region45: #{tpu_custom_call.1} parent=5 // pred_check
        %p300 = pneg %p299
      $region46: #{tpu_custom_call.1} parent=5 // pred_check_branch
        %302 = sbr.rel (%p300) target = $region48
      $region47: #{tpu_custom_call.1} parent=5 // pred_region
        // Predicated region
        $region49: #{tpu_custom_call.1} parent=47 // pred_check
          %p303 = pneg %p40
        $region50: #{tpu_custom_call.1} parent=47 // pred_check_branch
          %305 = sbr.rel (%p303) target = $region52
        $region51: #{tpu_custom_call.1} parent=47 // pred_region
          %s306 = smul.u32 2, %s20
          %p307 = scmp.lt.s32.totalorder %s306, 7
          %s308 = scalar_select %p307, %s306, 7
          %s309 = smul.addr %s308, 8
          %s310 = scalar_lea.vmem %s0, %s309
          %s311 = smul.u32 2, %s20
        $region52: #{tpu_custom_call.1} parent=47 // pred_fallthru
          _
      $region48: #{tpu_custom_call.1} parent=5 // pred_fallthru
        _
      %p312 = scmp.le.s32.totalorder 1, %s20
      %p313 = scmp.lt.s32.totalorder %s20, 5
      %p314 = pnand %p312, %p313
      %p315 = pneg %p314
      // Predicated region
      $region53: #{tpu_custom_call.1} parent=5 // pred_check
        _
      $region54: #{tpu_custom_call.1} parent=5 // pred_check_branch
        %317 = sbr.rel (%p314) target = $region56
      $region55: #{tpu_custom_call.1} parent=5 // pred_region
        %s318 = ssub.s32 %s20, 1
        // Predicated region
        $region57: #{tpu_custom_call.1} parent=55 // pred_check
          %p319 = pneg %p109
        $region58: #{tpu_custom_call.1} parent=55 // pred_check_branch
          %321 = sbr.rel (%p319) target = $region60
        $region59: #{tpu_custom_call.1} parent=55 // pred_region
          %322 = dma.done [#allocation3], 8192
        $region60: #{tpu_custom_call.1} parent=55 // pred_fallthru
          _
        // Predicated region
        $region61: #{tpu_custom_call.1} parent=55 // pred_check
          %p323 = pneg %p151
        $region62: #{tpu_custom_call.1} parent=55 // pred_check_branch
          %325 = sbr.rel (%p323) target = $region64
        $region63: #{tpu_custom_call.1} parent=55 // pred_region
          %326 = dma.done [#allocation6], 2048
        $region64: #{tpu_custom_call.1} parent=55 // pred_fallthru
          _
        %s327 = smul.u32 2, %s25
        %p328 = scmp.lt.s32.totalorder %s327, 7
        %s329 = scalar_select %p328, %s327, 7
        %s330 = smul.addr %s329, 8
        %s331 = scalar_lea.vmem %s0, %s330
        %p332 = pneg %p46
        %p333 = pneg %p43
        %p334 = pneg %p67
        %p335 = pneg %p64
        %p336 = pneg %p88
        %p337 = pneg %p85
        %p338 = pneg %p109
        %p339 = pneg %p106
        %p340 = pneg %p130
        %p341 = pneg %p127
        %p342 = pneg %p151
        %p343 = pneg %p148
        %p344 = pneg %p172
        %p345 = pneg %p169
        %p346 = pneg %p193
        %p347 = pneg %p190
        %p348 = pneg %p214
        %p349 = pneg %p211
        %p350 = pneg %p240
        %p351 = pneg %p237
        %s352 = sand.u32 %s227, 1
        %s353 = scalar_lea.sflag [#allocation4], %s352
        %s354 = sand.u32 %s227, 1
        %s355 = smul.addr %s354, 16
        %s356 = scalar_lea.vmem [#allocation7], %s355
        %s357 = smul.u32 2, %s25
        %p358 = scmp.lt.s32.totalorder %s357, 7
        %s359 = scalar_select %p358, %s357, 7
        %s360 = smul.addr %s359, 8
        %s361 = scalar_lea.vmem %s0, %s360
        %s362 = smul.u32 2, %s25
        %s363 = smul.u32 2, %s25
        %v365 = vld [vmem:[%s361] sm:$0xff]
        %v366 = vld [vmem:[%s361 + $0x8] sm:$0xff]
        %v367 = vld [vmem:[%s1] sm:$0xff]
        %v368 = vld [vmem:[%s1 + $0x8] sm:$0xff]
        %370 = vset.pattern.permute.xlu0 0
        %371 = vperm.xlu0 %370, %v365
        %v372 = vpop.permute.xlu0 %371
        %375 = vset.pattern.permute.xlu0 0
        %376 = vperm.xlu0 %375, %v366
        %v377 = vpop.permute.xlu0 %376
        %v381 = vlaneseq
        %v382 = vshrl.u32 %v381, 7
        %v383 = vsub.s32 0, %v382
        %v384 = vrot.slane %v367, %v383
        %v385 = vlaneseq
        %v386 = vshrl.u32 %v385, 7
        %v387 = vsub.s32 4, %v386
        %v388 = vrot.slane %v367, %v387
        %v389 = vlaneseq
        %v390 = vshrl.u32 %v389, 7
        %v391 = vsub.s32 0, %v390
        %v392 = vrot.slane %v368, %v391
        %v393 = vlaneseq
        %v394 = vshrl.u32 %v393, 7
        %v395 = vsub.s32 4, %v394
        %v396 = vrot.slane %v368, %v395
        %v401 = vlaneseq
        %v402 = vshrl.u32 %v401, 7
        %v403 = vsub.s32 0, %v402
        %v404 = vrot.slane %v384, %v403
        %v405 = vlaneseq
        %v406 = vshrl.u32 %v405, 7
        %v407 = vsub.s32 0, %v406
        %v408 = vrot.slane %v388, %v407
        %v409 = vlaneseq
        %v410 = vshrl.u32 %v409, 7
        %v411 = vsub.s32 0, %v410
        %v412 = vrot.slane %v392, %v411
        %v413 = vlaneseq
        %v414 = vshrl.u32 %v413, 7
        %v415 = vsub.s32 0, %v414
        %v416 = vrot.slane %v396, %v415
        %v417 = vmul.f32 %v372, %v404
        %v418 = vmul.f32 %v372, %v408
        %v419 = vmul.f32 %v372, %v412
        %v420 = vmul.f32 %v372, %v416
        %v421 = vmul.f32 %v377, %v404
        %v422 = vmul.f32 %v377, %v408
        %v423 = vmul.f32 %v377, %v412
        %v424 = vmul.f32 %v377, %v416
        %425 = vset.pattern.permute.xlu0 1
        %426 = vperm.xlu0 %425, %v365
        %v427 = vpop.permute.xlu0 %426
        %429 = vset.pattern.permute.xlu0 1
        %430 = vperm.xlu0 %429, %v366
        %v431 = vpop.permute.xlu0 %430
        %v433 = vlaneseq
        %v434 = vshrl.u32 %v433, 7
        %v435 = vsub.s32 1, %v434
        %v436 = vrot.slane %v367, %v435
        %v437 = vlaneseq
        %v438 = vshrl.u32 %v437, 7
        %v439 = vsub.s32 5, %v438
        %v440 = vrot.slane %v367, %v439
        %v441 = vlaneseq
        %v442 = vshrl.u32 %v441, 7
        %v443 = vsub.s32 1, %v442
        %v444 = vrot.slane %v368, %v443
        %v445 = vlaneseq
        %v446 = vshrl.u32 %v445, 7
        %v447 = vsub.s32 5, %v446
        %v448 = vrot.slane %v368, %v447
        %v453 = vlaneseq
        %v454 = vshrl.u32 %v453, 7
        %v455 = vsub.s32 1, %v454
        %v456 = vrot.slane %v436, %v455
        %v457 = vlaneseq
        %v458 = vshrl.u32 %v457, 7
        %v459 = vsub.s32 1, %v458
        %v460 = vrot.slane %v440, %v459
        %v461 = vlaneseq
        %v462 = vshrl.u32 %v461, 7
        %v463 = vsub.s32 1, %v462
        %v464 = vrot.slane %v444, %v463
        %v465 = vlaneseq
        %v466 = vshrl.u32 %v465, 7
        %v467 = vsub.s32 1, %v466
        %v468 = vrot.slane %v448, %v467
        %v469 = vmul.f32 %v427, %v456
        %v470 = vmul.f32 %v427, %v460
        %v471 = vmul.f32 %v427, %v464
        %v472 = vmul.f32 %v427, %v468
        %v473 = vmul.f32 %v431, %v456
        %v474 = vmul.f32 %v431, %v460
        %v475 = vmul.f32 %v431, %v464
        %v476 = vmul.f32 %v431, %v468
        %v477 = vadd.f32 %v417, %v469
        %v478 = vadd.f32 %v418, %v470
        %v479 = vadd.f32 %v419, %v471
        %v480 = vadd.f32 %v420, %v472
        %v481 = vadd.f32 %v421, %v473
        %v482 = vadd.f32 %v422, %v474
        %v483 = vadd.f32 %v423, %v475
        %v484 = vadd.f32 %v424, %v476
        %485 = vset.pattern.permute.xlu0 2
        %486 = vperm.xlu0 %485, %v365
        %v487 = vpop.permute.xlu0 %486
        %489 = vset.pattern.permute.xlu0 2
        %490 = vperm.xlu0 %489, %v366
        %v491 = vpop.permute.xlu0 %490
        %v493 = vlaneseq
        %v494 = vshrl.u32 %v493, 7
        %v495 = vsub.s32 2, %v494
        %v496 = vrot.slane %v367, %v495
        %v497 = vlaneseq
        %v498 = vshrl.u32 %v497, 7
        %v499 = vsub.s32 6, %v498
        %v500 = vrot.slane %v367, %v499
        %v501 = vlaneseq
        %v502 = vshrl.u32 %v501, 7
        %v503 = vsub.s32 2, %v502
        %v504 = vrot.slane %v368, %v503
        %v505 = vlaneseq
        %v506 = vshrl.u32 %v505, 7
        %v507 = vsub.s32 6, %v506
        %v508 = vrot.slane %v368, %v507
        %v513 = vlaneseq
        %v514 = vshrl.u32 %v513, 7
        %v515 = vsub.s32 2, %v514
        %v516 = vrot.slane %v496, %v515
        %v517 = vlaneseq
        %v518 = vshrl.u32 %v517, 7
        %v519 = vsub.s32 2, %v518
        %v520 = vrot.slane %v500, %v519
        %v521 = vlaneseq
        %v522 = vshrl.u32 %v521, 7
        %v523 = vsub.s32 2, %v522
        %v524 = vrot.slane %v504, %v523
        %v525 = vlaneseq
        %v526 = vshrl.u32 %v525, 7
        %v527 = vsub.s32 2, %v526
        %v528 = vrot.slane %v508, %v527
        %v529 = vmul.f32 %v487, %v516
        %v530 = vmul.f32 %v487, %v520
        %v531 = vmul.f32 %v487, %v524
        %v532 = vmul.f32 %v487, %v528
        %v533 = vmul.f32 %v491, %v516
        %v534 = vmul.f32 %v491, %v520
        %v535 = vmul.f32 %v491, %v524
        %v536 = vmul.f32 %v491, %v528
        %v537 = vadd.f32 %v477, %v529
        %v538 = vadd.f32 %v478, %v530
        %v539 = vadd.f32 %v479, %v531
        %v540 = vadd.f32 %v480, %v532
        %v541 = vadd.f32 %v481, %v533
        %v542 = vadd.f32 %v482, %v534
        %v543 = vadd.f32 %v483, %v535
        %v544 = vadd.f32 %v484, %v536
        %545 = vset.pattern.permute.xlu0 3
        %546 = vperm.xlu0 %545, %v365
        %v547 = vpop.permute.xlu0 %546
        %549 = vset.pattern.permute.xlu0 3
        %550 = vperm.xlu0 %549, %v366
        %v551 = vpop.permute.xlu0 %550
        %v553 = vlaneseq
        %v554 = vshrl.u32 %v553, 7
        %v555 = vsub.s32 3, %v554
        %v556 = vrot.slane %v367, %v555
        %v557 = vlaneseq
        %v558 = vshrl.u32 %v557, 7
        %v559 = vsub.s32 7, %v558
        %v560 = vrot.slane %v367, %v559
        %v561 = vlaneseq
        %v562 = vshrl.u32 %v561, 7
        %v563 = vsub.s32 3, %v562
        %v564 = vrot.slane %v368, %v563
        %v565 = vlaneseq
        %v566 = vshrl.u32 %v565, 7
        %v567 = vsub.s32 7, %v566
        %v568 = vrot.slane %v368, %v567
        %v573 = vlaneseq
        %v574 = vshrl.u32 %v573, 7
        %v575 = vsub.s32 3, %v574
        %v576 = vrot.slane %v556, %v575
        %v577 = vlaneseq
        %v578 = vshrl.u32 %v577, 7
        %v579 = vsub.s32 3, %v578
        %v580 = vrot.slane %v560, %v579
        %v581 = vlaneseq
        %v582 = vshrl.u32 %v581, 7
        %v583 = vsub.s32 3, %v582
        %v584 = vrot.slane %v564, %v583
        %v585 = vlaneseq
        %v586 = vshrl.u32 %v585, 7
        %v587 = vsub.s32 3, %v586
        %v588 = vrot.slane %v568, %v587
        %v589 = vmul.f32 %v547, %v576
        %v590 = vmul.f32 %v547, %v580
        %v591 = vmul.f32 %v547, %v584
        %v592 = vmul.f32 %v547, %v588
        %v593 = vmul.f32 %v551, %v576
        %v594 = vmul.f32 %v551, %v580
        %v595 = vmul.f32 %v551, %v584
        %v596 = vmul.f32 %v551, %v588
        %v597 = vadd.f32 %v537, %v589
        %v598 = vadd.f32 %v538, %v590
        %v599 = vadd.f32 %v539, %v591
        %v600 = vadd.f32 %v540, %v592
        %v601 = vadd.f32 %v541, %v593
        %v602 = vadd.f32 %v542, %v594
        %v603 = vadd.f32 %v543, %v595
        %v604 = vadd.f32 %v544, %v596
        %v605 = vld [vmem:[%s2] sm:$0xf]
        %v607 = vlaneseq
        %v608 = vshrl.u32 %v607, 7
        %v609 = vsub.s32 0, %v608
        %v610 = vrot.slane %v605, %v609
        %v611 = vlaneseq
        %v612 = vshrl.u32 %v611, 7
        %v613 = vsub.s32 1, %v612
        %v614 = vrot.slane %v605, %v613
        %v615 = vlaneseq
        %v616 = vshrl.u32 %v615, 7
        %v617 = vsub.s32 2, %v616
        %v618 = vrot.slane %v605, %v617
        %v619 = vlaneseq
        %v620 = vshrl.u32 %v619, 7
        %v621 = vsub.s32 3, %v620
        %v622 = vrot.slane %v605, %v621
        %v627 = vadd.f32 %v597, %v610
        %v628 = vadd.f32 %v598, %v614
        %v629 = vadd.f32 %v599, %v618
        %v630 = vadd.f32 %v600, %v622
        %v631 = vadd.f32 %v601, %v610
        %v632 = vadd.f32 %v602, %v614
        %v633 = vadd.f32 %v603, %v618
        %v634 = vadd.f32 %v604, %v622
        %v635 = vmax.f32 %v627, 0.0
        %v636 = vmax.f32 %v628, 0.0
        %v637 = vmax.f32 %v629, 0.0
        %v638 = vmax.f32 %v630, 0.0
        %v639 = vmax.f32 %v631, 0.0
        %v640 = vmax.f32 %v632, 0.0
        %v641 = vmax.f32 %v633, 0.0
        %v642 = vmax.f32 %v634, 0.0
        %v643 = vpack.c.bf16 %v639, %v635
        %v644 = vpack.c.bf16 %v640, %v636
        %v645 = vpack.c.bf16 %v641, %v637
        %v646 = vpack.c.bf16 %v642, %v638
        %v647 = vld [vmem:[#allocation2] sm:$0xff]
        %v648 = vld [vmem:[#allocation2 + $0x8] sm:$0xff]
        %v649 = vld [vmem:[#allocation2 + $0x10] sm:$0xff]
        %v650 = vld [vmem:[#allocation2 + $0x18] sm:$0xff]
        %v651 = vld [vmem:[#allocation2 + $0x20] sm:$0xff]
        %v652 = vld [vmem:[#allocation2 + $0x28] sm:$0xff]
        %v653 = vld [vmem:[#allocation2 + $0x30] sm:$0xff]
        %v654 = vld [vmem:[#allocation2 + $0x38] sm:$0xff]
        %v655 = vld [vmem:[#allocation2 + $0x40] sm:$0xff]
        %v656 = vld [vmem:[#allocation2 + $0x48] sm:$0xff]
        %v657 = vld [vmem:[#allocation2 + $0x50] sm:$0xff]
        %v658 = vld [vmem:[#allocation2 + $0x58] sm:$0xff]
        %v659 = vld [vmem:[#allocation2 + $0x60] sm:$0xff]
        %v660 = vld [vmem:[#allocation2 + $0x68] sm:$0xff]
        %v661 = vld [vmem:[#allocation2 + $0x70] sm:$0xff]
        %v662 = vld [vmem:[#allocation2 + $0x78] sm:$0xff]
        %v663 = vld [vmem:[#allocation2 + $0x80] sm:$0xff]
        %v664 = vld [vmem:[#allocation2 + $0x88] sm:$0xff]
        %v665 = vld [vmem:[#allocation2 + $0x90] sm:$0xff]
        %v666 = vld [vmem:[#allocation2 + $0x98] sm:$0xff]
        %v667 = vld [vmem:[#allocation2 + $0xa0] sm:$0xff]
        %v668 = vld [vmem:[#allocation2 + $0xa8] sm:$0xff]
        %v669 = vld [vmem:[#allocation2 + $0xb0] sm:$0xff]
        %v670 = vld [vmem:[#allocation2 + $0xb8] sm:$0xff]
        %v671 = vld [vmem:[#allocation2 + $0xc0] sm:$0xff]
        %v672 = vld [vmem:[#allocation2 + $0xc8] sm:$0xff]
        %v673 = vld [vmem:[#allocation2 + $0xd0] sm:$0xff]
        %v674 = vld [vmem:[#allocation2 + $0xd8] sm:$0xff]
        %v675 = vld [vmem:[#allocation2 + $0xe0] sm:$0xff]
        %v676 = vld [vmem:[#allocation2 + $0xe8] sm:$0xff]
        %v677 = vld [vmem:[#allocation2 + $0xf0] sm:$0xff]
        %v678 = vld [vmem:[#allocation2 + $0xf8] sm:$0xff]
        %v679 = vld [vmem:[#allocation2 + $0x100] sm:$0xff]
        %v680 = vld [vmem:[#allocation2 + $0x108] sm:$0xff]
        %v681 = vld [vmem:[#allocation2 + $0x110] sm:$0xff]
        %v682 = vld [vmem:[#allocation2 + $0x118] sm:$0xff]
        %v683 = vld [vmem:[#allocation2 + $0x120] sm:$0xff]
        %v684 = vld [vmem:[#allocation2 + $0x128] sm:$0xff]
        %v685 = vld [vmem:[#allocation2 + $0x130] sm:$0xff]
        %v686 = vld [vmem:[#allocation2 + $0x138] sm:$0xff]
        %v687 = vld [vmem:[#allocation2 + $0x140] sm:$0xff]
        %v688 = vld [vmem:[#allocation2 + $0x148] sm:$0xff]
        %v689 = vld [vmem:[#allocation2 + $0x150] sm:$0xff]
        %v690 = vld [vmem:[#allocation2 + $0x158] sm:$0xff]
        %v691 = vld [vmem:[#allocation2 + $0x160] sm:$0xff]
        %v692 = vld [vmem:[#allocation2 + $0x168] sm:$0xff]
        %v693 = vld [vmem:[#allocation2 + $0x170] sm:$0xff]
        %v694 = vld [vmem:[#allocation2 + $0x178] sm:$0xff]
        %v695 = vld [vmem:[#allocation2 + $0x180] sm:$0xff]
        %v696 = vld [vmem:[#allocation2 + $0x188] sm:$0xff]
        %v697 = vld [vmem:[#allocation2 + $0x190] sm:$0xff]
        %v698 = vld [vmem:[#allocation2 + $0x198] sm:$0xff]
        %v699 = vld [vmem:[#allocation2 + $0x1a0] sm:$0xff]
        %v700 = vld [vmem:[#allocation2 + $0x1a8] sm:$0xff]
        %v701 = vld [vmem:[#allocation2 + $0x1b0] sm:$0xff]
        %v702 = vld [vmem:[#allocation2 + $0x1b8] sm:$0xff]
        %v703 = vld [vmem:[#allocation2 + $0x1c0] sm:$0xff]
        %v704 = vld [vmem:[#allocation2 + $0x1c8] sm:$0xff]
        %v705 = vld [vmem:[#allocation2 + $0x1d0] sm:$0xff]
        %v706 = vld [vmem:[#allocation2 + $0x1d8] sm:$0xff]
        %v707 = vld [vmem:[#allocation2 + $0x1e0] sm:$0xff]
        %v708 = vld [vmem:[#allocation2 + $0x1e8] sm:$0xff]
        %v709 = vld [vmem:[#allocation2 + $0x1f0] sm:$0xff]
        %v710 = vld [vmem:[#allocation2 + $0x1f8] sm:$0xff]
        %v711 = vld [vmem:[%s4] sm:$0x3]
        %v713 = vlaneseq
        %v714 = vshrl.u32 %v713, 7
        %v715 = vsub.s32 0, %v714
        %v716 = vrot.slane %v711, %v715
        %v717 = vlaneseq
        %v718 = vshrl.u32 %v717, 7
        %v719 = vsub.s32 1, %v718
        %v720 = vrot.slane %v711, %v719
        %v787 = vunpack.c.l.b16 %v647
        %v788 = vunpack.c.h.b16 %v647
        %v789 = vunpack.c.l.b16 %v648
        %v790 = vunpack.c.h.b16 %v648
        %v791 = vunpack.c.l.b16 %v649
        %v792 = vunpack.c.h.b16 %v649
        %v793 = vunpack.c.l.b16 %v650
        %v794 = vunpack.c.h.b16 %v650
        %v795 = vunpack.c.l.b16 %v651
        %v796 = vunpack.c.h.b16 %v651
        %v797 = vunpack.c.l.b16 %v652
        %v798 = vunpack.c.h.b16 %v652
        %v799 = vunpack.c.l.b16 %v653
        %v800 = vunpack.c.h.b16 %v653
        %v801 = vunpack.c.l.b16 %v654
        %v802 = vunpack.c.h.b16 %v654
        %v803 = vunpack.c.l.b16 %v655
        %v804 = vunpack.c.h.b16 %v655
        %v805 = vunpack.c.l.b16 %v656
        %v806 = vunpack.c.h.b16 %v656
        %v807 = vunpack.c.l.b16 %v657
        %v808 = vunpack.c.h.b16 %v657
        %v809 = vunpack.c.l.b16 %v658
        %v810 = vunpack.c.h.b16 %v658
        %v811 = vunpack.c.l.b16 %v659
        %v812 = vunpack.c.h.b16 %v659
        %v813 = vunpack.c.l.b16 %v660
        %v814 = vunpack.c.h.b16 %v660
        %v815 = vunpack.c.l.b16 %v661
        %v816 = vunpack.c.h.b16 %v661
        %v817 = vunpack.c.l.b16 %v662
        %v818 = vunpack.c.h.b16 %v662
        %v819 = vunpack.c.l.b16 %v663
        %v820 = vunpack.c.h.b16 %v663
        %v821 = vunpack.c.l.b16 %v664
        %v822 = vunpack.c.h.b16 %v664
        %v823 = vunpack.c.l.b16 %v665
        %v824 = vunpack.c.h.b16 %v665
        %v825 = vunpack.c.l.b16 %v666
        %v826 = vunpack.c.h.b16 %v666
        %v827 = vunpack.c.l.b16 %v667
        %v828 = vunpack.c.h.b16 %v667
        %v829 = vunpack.c.l.b16 %v668
        %v830 = vunpack.c.h.b16 %v668
        %v831 = vunpack.c.l.b16 %v669
        %v832 = vunpack.c.h.b16 %v669
        %v833 = vunpack.c.l.b16 %v670
        %v834 = vunpack.c.h.b16 %v670
        %v835 = vunpack.c.l.b16 %v671
        %v836 = vunpack.c.h.b16 %v671
        %v837 = vunpack.c.l.b16 %v672
        %v838 = vunpack.c.h.b16 %v672
        %v839 = vunpack.c.l.b16 %v673
        %v840 = vunpack.c.h.b16 %v673
        %v841 = vunpack.c.l.b16 %v674
        %v842 = vunpack.c.h.b16 %v674
        %v843 = vunpack.c.l.b16 %v675
        %v844 = vunpack.c.h.b16 %v675
        %v845 = vunpack.c.l.b16 %v676
        %v846 = vunpack.c.h.b16 %v676
        %v847 = vunpack.c.l.b16 %v677
        %v848 = vunpack.c.h.b16 %v677
        %v849 = vunpack.c.l.b16 %v678
        %v850 = vunpack.c.h.b16 %v678
        %v851 = vunpack.c.l.b16 %v679
        %v852 = vunpack.c.h.b16 %v679
        %v853 = vunpack.c.l.b16 %v680
        %v854 = vunpack.c.h.b16 %v680
        %v855 = vunpack.c.l.b16 %v681
        %v856 = vunpack.c.h.b16 %v681
        %v857 = vunpack.c.l.b16 %v682
        %v858 = vunpack.c.h.b16 %v682
        %v859 = vunpack.c.l.b16 %v683
        %v860 = vunpack.c.h.b16 %v683
        %v861 = vunpack.c.l.b16 %v684
        %v862 = vunpack.c.h.b16 %v684
        %v863 = vunpack.c.l.b16 %v685
        %v864 = vunpack.c.h.b16 %v685
        %v865 = vunpack.c.l.b16 %v686
        %v866 = vunpack.c.h.b16 %v686
        %v867 = vunpack.c.l.b16 %v687
        %v868 = vunpack.c.h.b16 %v687
        %v869 = vunpack.c.l.b16 %v688
        %v870 = vunpack.c.h.b16 %v688
        %v871 = vunpack.c.l.b16 %v689
        %v872 = vunpack.c.h.b16 %v689
        %v873 = vunpack.c.l.b16 %v690
        %v874 = vunpack.c.h.b16 %v690
        %v875 = vunpack.c.l.b16 %v691
        %v876 = vunpack.c.h.b16 %v691
        %v877 = vunpack.c.l.b16 %v692
        %v878 = vunpack.c.h.b16 %v692
        %v879 = vunpack.c.l.b16 %v693
        %v880 = vunpack.c.h.b16 %v693
        %v881 = vunpack.c.l.b16 %v694
        %v882 = vunpack.c.h.b16 %v694
        %v883 = vunpack.c.l.b16 %v695
        %v884 = vunpack.c.h.b16 %v695
        %v885 = vunpack.c.l.b16 %v696
        %v886 = vunpack.c.h.b16 %v696
        %v887 = vunpack.c.l.b16 %v697
        %v888 = vunpack.c.h.b16 %v697
        %v889 = vunpack.c.l.b16 %v698
        %v890 = vunpack.c.h.b16 %v698
        %v891 = vunpack.c.l.b16 %v699
        %v892 = vunpack.c.h.b16 %v699
        %v893 = vunpack.c.l.b16 %v700
        %v894 = vunpack.c.h.b16 %v700
        %v895 = vunpack.c.l.b16 %v701
        %v896 = vunpack.c.h.b16 %v701
        %v897 = vunpack.c.l.b16 %v702
        %v898 = vunpack.c.h.b16 %v702
        %v899 = vunpack.c.l.b16 %v703
        %v900 = vunpack.c.h.b16 %v703
        %v901 = vunpack.c.l.b16 %v704
        %v902 = vunpack.c.h.b16 %v704
        %v903 = vunpack.c.l.b16 %v705
        %v904 = vunpack.c.h.b16 %v705
        %v905 = vunpack.c.l.b16 %v706
        %v906 = vunpack.c.h.b16 %v706
        %v907 = vunpack.c.l.b16 %v707
        %v908 = vunpack.c.h.b16 %v707
        %v909 = vunpack.c.l.b16 %v708
        %v910 = vunpack.c.h.b16 %v708
        %v911 = vunpack.c.l.b16 %v709
        %v912 = vunpack.c.h.b16 %v709
        %v913 = vunpack.c.l.b16 %v710
        %v914 = vunpack.c.h.b16 %v710
        %v915 = vpack.c.b16 %v789, %v787
        %v916 = vpack.c.b16 %v790, %v788
        %v917 = vpack.c.b16 %v793, %v791
        %v918 = vpack.c.b16 %v794, %v792
        %v919 = vpack.c.b16 %v797, %v795
        %v920 = vpack.c.b16 %v798, %v796
        %v921 = vpack.c.b16 %v801, %v799
        %v922 = vpack.c.b16 %v802, %v800
        %v923 = vpack.c.b16 %v805, %v803
        %v924 = vpack.c.b16 %v806, %v804
        %v925 = vpack.c.b16 %v809, %v807
        %v926 = vpack.c.b16 %v810, %v808
        %v927 = vpack.c.b16 %v813, %v811
        %v928 = vpack.c.b16 %v814, %v812
        %v929 = vpack.c.b16 %v817, %v815
        %v930 = vpack.c.b16 %v818, %v816
        %v931 = vpack.c.b16 %v821, %v819
        %v932 = vpack.c.b16 %v822, %v820
        %v933 = vpack.c.b16 %v825, %v823
        %v934 = vpack.c.b16 %v826, %v824
        %v935 = vpack.c.b16 %v829, %v827
        %v936 = vpack.c.b16 %v830, %v828
        %v937 = vpack.c.b16 %v833, %v831
        %v938 = vpack.c.b16 %v834, %v832
        %v939 = vpack.c.b16 %v837, %v835
        %v940 = vpack.c.b16 %v838, %v836
        %v941 = vpack.c.b16 %v841, %v839
        %v942 = vpack.c.b16 %v842, %v840
        %v943 = vpack.c.b16 %v845, %v843
        %v944 = vpack.c.b16 %v846, %v844
        %v945 = vpack.c.b16 %v849, %v847
        %v946 = vpack.c.b16 %v850, %v848
        %v947 = vpack.c.b16 %v853, %v851
        %v948 = vpack.c.b16 %v854, %v852
        %v949 = vpack.c.b16 %v857, %v855
        %v950 = vpack.c.b16 %v858, %v856
        %v951 = vpack.c.b16 %v861, %v859
        %v952 = vpack.c.b16 %v862, %v860
        %v953 = vpack.c.b16 %v865, %v863
        %v954 = vpack.c.b16 %v866, %v864
        %v955 = vpack.c.b16 %v869, %v867
        %v956 = vpack.c.b16 %v870, %v868
        %v957 = vpack.c.b16 %v873, %v871
        %v958 = vpack.c.b16 %v874, %v872
        %v959 = vpack.c.b16 %v877, %v875
        %v960 = vpack.c.b16 %v878, %v876
        %v961 = vpack.c.b16 %v881, %v879
        %v962 = vpack.c.b16 %v882, %v880
        %v963 = vpack.c.b16 %v885, %v883
        %v964 = vpack.c.b16 %v886, %v884
        %v965 = vpack.c.b16 %v889, %v887
        %v966 = vpack.c.b16 %v890, %v888
        %v967 = vpack.c.b16 %v893, %v891
        %v968 = vpack.c.b16 %v894, %v892
        %v969 = vpack.c.b16 %v897, %v895
        %v970 = vpack.c.b16 %v898, %v896
        %v971 = vpack.c.b16 %v901, %v899
        %v972 = vpack.c.b16 %v902, %v900
        %v973 = vpack.c.b16 %v905, %v903
        %v974 = vpack.c.b16 %v906, %v904
        %v975 = vpack.c.b16 %v909, %v907
        %v976 = vpack.c.b16 %v910, %v908
        %v977 = vpack.c.b16 %v913, %v911
        %v978 = vpack.c.b16 %v914, %v912
        %1043 = vmatprep.subr.bf16.mxu0 %v916
        %1044 = vmatpush1.bf16.msra.mxu0 %v915
        %1045 = vmatprep.subr.bf16.mxu0 %v918
        %1046 = vmatpush1.bf16.msra.mxu0 %v917
        %1047 = vmatprep.subr.bf16.mxu0 %v920
        %1048 = vmatpush1.bf16.msra.mxu0 %v919
        %1049 = vmatprep.subr.bf16.mxu0 %v922
        %1050 = vmatpush1.bf16.msra.mxu0 %v921
        %1051 = vmatprep.subr.bf16.mxu0 %v924
        %1052 = vmatpush1.bf16.msra.mxu0 %v923
        %1053 = vmatprep.subr.bf16.mxu0 %v926
        %1054 = vmatpush1.bf16.msra.mxu0 %v925
        %1055 = vmatprep.subr.bf16.mxu0 %v928
        %1056 = vmatpush1.bf16.msra.mxu0 %v927
        %1057 = vmatprep.subr.bf16.mxu0 %v930
        %1058 = vmatpush1.bf16.msra.mxu0 %v929
        %1059 = vmatprep.subr.bf16.mxu0 %v932
        %1060 = vmatpush1.bf16.msra.mxu0 %v931
        %1061 = vmatprep.subr.bf16.mxu0 %v934
        %1062 = vmatpush1.bf16.msra.mxu0 %v933
        %1063 = vmatprep.subr.bf16.mxu0 %v936
        %1064 = vmatpush1.bf16.msra.mxu0 %v935
        %1065 = vmatprep.subr.bf16.mxu0 %v938
        %1066 = vmatpush1.bf16.msra.mxu0 %v937
        %1067 = vmatprep.subr.bf16.mxu0 %v940
        %1068 = vmatpush1.bf16.msra.mxu0 %v939
        %1069 = vmatprep.subr.bf16.mxu0 %v942
        %1070 = vmatpush1.bf16.msra.mxu0 %v941
        %1071 = vmatprep.subr.bf16.mxu0 %v944
        %1072 = vmatpush1.bf16.msra.mxu0 %v943
        %1073 = vmatprep.subr.bf16.mxu0 %v946
        %1074 = vmatpush1.bf16.msra.mxu0 %v945
        %1075 = vmatprep.mubr.bf16.mxu0 %v644
        %1076 = vmatmul.mubr.bf16.gmra.mrb[0].mxu0 %v643
        %v1077 = vpop.f32.mrb[0].mxu0
        %v1078 = vadd.f32 %v716, %v1077
        %v1079 = vpop.f32.mrb[0].mxu0
        %v1080 = vadd.f32 %v720, %v1079
        %v1081 = vpop.f32.mrb[0].mxu0
        %v1082 = vadd.f32 %v716, %v1081
        %v1083 = vpop.f32.mrb[0].mxu0
        %v1084 = vadd.f32 %v720, %v1083
        %1085 = vdwg.mxu0
        %1086 = vmatprep.subr.bf16.mxu0 %v948
        %1087 = vmatpush1.bf16.msra.mxu0 %v947
        %1088 = vmatprep.subr.bf16.mxu0 %v950
        %1089 = vmatpush1.bf16.msra.mxu0 %v949
        %1090 = vmatprep.subr.bf16.mxu0 %v952
        %1091 = vmatpush1.bf16.msra.mxu0 %v951
        %1092 = vmatprep.subr.bf16.mxu0 %v954
        %1093 = vmatpush1.bf16.msra.mxu0 %v953
        %1094 = vmatprep.subr.bf16.mxu0 %v956
        %1095 = vmatpush1.bf16.msra.mxu0 %v955
        %1096 = vmatprep.subr.bf16.mxu0 %v958
        %1097 = vmatpush1.bf16.msra.mxu0 %v957
        %1098 = vmatprep.subr.bf16.mxu0 %v960
        %1099 = vmatpush1.bf16.msra.mxu0 %v959
        %1100 = vmatprep.subr.bf16.mxu0 %v962
        %1101 = vmatpush1.bf16.msra.mxu0 %v961
        %1102 = vmatprep.subr.bf16.mxu0 %v964
        %1103 = vmatpush1.bf16.msra.mxu0 %v963
        %1104 = vmatprep.subr.bf16.mxu0 %v966
        %1105 = vmatpush1.bf16.msra.mxu0 %v965
        %1106 = vmatprep.subr.bf16.mxu0 %v968
        %1107 = vmatpush1.bf16.msra.mxu0 %v967
        %1108 = vmatprep.subr.bf16.mxu0 %v970
        %1109 = vmatpush1.bf16.msra.mxu0 %v969
        %1110 = vmatprep.subr.bf16.mxu0 %v972
        %1111 = vmatpush1.bf16.msra.mxu0 %v971
        %1112 = vmatprep.subr.bf16.mxu0 %v974
        %1113 = vmatpush1.bf16.msra.mxu0 %v973
        %1114 = vmatprep.subr.bf16.mxu0 %v976
        %1115 = vmatpush1.bf16.msra.mxu0 %v975
        %1116 = vmatprep.subr.bf16.mxu0 %v978
        %1117 = vmatpush1.bf16.msra.mxu0 %v977
        %1118 = vmatprep.mubr.bf16.mxu0 %v646
        %1119 = vmatmul.mubr.bf16.gmra.mrb[0].mxu0 %v645
        %v1120 = vpop.f32.mrb[0].mxu0
        %v1121 = vadd.f32 %v1078, %v1120
        %v1122 = vpop.f32.mrb[0].mxu0
        %v1123 = vadd.f32 %v1080, %v1122
        %v1124 = vpop.f32.mrb[0].mxu0
        %v1125 = vadd.f32 %v1082, %v1124
        %v1126 = vpop.f32.mrb[0].mxu0
        %v1127 = vadd.f32 %v1084, %v1126
        %1128 = vdwg.mxu0
        %v1129 = vxor.u32 %v1121, 2147483648
        %v1130 = vxor.u32 %v1123, 2147483648
        %v1131 = vxor.u32 %v1125, 2147483648
        %v1132 = vxor.u32 %v1127, 2147483648
        %v1133 = vmul.f32 %v1129, 1.442695
        %v1134 = vpow.pop %v1133
        %v1135 = vmul.f32 %v1130, 1.442695
        %v1136 = vpow.pop %v1135
        %v1137 = vmul.f32 %v1131, 1.442695
        %v1138 = vpow.pop %v1137
        %v1139 = vmul.f32 %v1132, 1.442695
        %v1140 = vpow.pop %v1139
        %v1141 = vadd.f32 %v1134, 1.0
        %v1142 = vadd.f32 %v1136, 1.0
        %v1143 = vadd.f32 %v1138, 1.0
        %v1144 = vadd.f32 %v1140, 1.0
        %v1145 = vrcp.pop %v1141
        %v1146 = vmul.f32 1.0, %v1145
        %v1147 = vrcp.pop %v1142
        %v1148 = vmul.f32 1.0, %v1147
        %v1149 = vrcp.pop %v1143
        %v1150 = vmul.f32 1.0, %v1149
        %v1151 = vrcp.pop %v1144
        %v1152 = vmul.f32 1.0, %v1151
        %v1153 = vpack.c.bf16 %v1150, %v1146
        %v1154 = vpack.c.bf16 %v1152, %v1148
        %v1155 = vld [vmem:[#allocation5] sm:$0xf]
        %v1156 = vld [vmem:[#allocation5 + $0x4] sm:$0xf]
        %v1157 = vld [vmem:[#allocation5 + $0x8] sm:$0xf]
        %v1158 = vld [vmem:[#allocation5 + $0xc] sm:$0xf]
        %v1159 = vld [vmem:[#allocation5 + $0x10] sm:$0xf]
        %v1160 = vld [vmem:[#allocation5 + $0x14] sm:$0xf]
        %v1161 = vld [vmem:[#allocation5 + $0x18] sm:$0xf]
        %v1162 = vld [vmem:[#allocation5 + $0x1c] sm:$0xf]
        %v1163 = vld [vmem:[#allocation5 + $0x20] sm:$0xf]
        %v1164 = vld [vmem:[#allocation5 + $0x24] sm:$0xf]
        %v1165 = vld [vmem:[#allocation5 + $0x28] sm:$0xf]
        %v1166 = vld [vmem:[#allocation5 + $0x2c] sm:$0xf]
        %v1167 = vld [vmem:[#allocation5 + $0x30] sm:$0xf]
        %v1168 = vld [vmem:[#allocation5 + $0x34] sm:$0xf]
        %v1169 = vld [vmem:[#allocation5 + $0x38] sm:$0xf]
        %v1170 = vld [vmem:[#allocation5 + $0x3c] sm:$0xf]
        %v1171 = vld [vmem:[#allocation5 + $0x40] sm:$0xf]
        %v1172 = vld [vmem:[#allocation5 + $0x44] sm:$0xf]
        %v1173 = vld [vmem:[#allocation5 + $0x48] sm:$0xf]
        %v1174 = vld [vmem:[#allocation5 + $0x4c] sm:$0xf]
        %v1175 = vld [vmem:[#allocation5 + $0x50] sm:$0xf]
        %v1176 = vld [vmem:[#allocation5 + $0x54] sm:$0xf]
        %v1177 = vld [vmem:[#allocation5 + $0x58] sm:$0xf]
        %v1178 = vld [vmem:[#allocation5 + $0x5c] sm:$0xf]
        %v1179 = vld [vmem:[#allocation5 + $0x60] sm:$0xf]
        %v1180 = vld [vmem:[#allocation5 + $0x64] sm:$0xf]
        %v1181 = vld [vmem:[#allocation5 + $0x68] sm:$0xf]
        %v1182 = vld [vmem:[#allocation5 + $0x6c] sm:$0xf]
        %v1183 = vld [vmem:[#allocation5 + $0x70] sm:$0xf]
        %v1184 = vld [vmem:[#allocation5 + $0x74] sm:$0xf]
        %v1185 = vld [vmem:[#allocation5 + $0x78] sm:$0xf]
        %v1186 = vld [vmem:[#allocation5 + $0x7c] sm:$0xf]
        %v1187 = vld [vmem:[%s6] sm:$0x1]
        %v1189 = vlaneseq
        %v1190 = vshrl.u32 %v1189, 7
        %v1191 = vsub.s32 0, %v1190
        %v1192 = vrot.slane %v1187, %v1191
        %v1226 = vunpack.c.l.b16 %v1155
        %v1227 = vunpack.c.l.b16 %v1156
        %v1228 = vunpack.c.l.b16 %v1157
        %v1229 = vunpack.c.l.b16 %v1158
        %v1230 = vunpack.c.l.b16 %v1159
        %v1231 = vunpack.c.l.b16 %v1160
        %v1232 = vunpack.c.l.b16 %v1161
        %v1233 = vunpack.c.l.b16 %v1162
        %v1234 = vunpack.c.l.b16 %v1163
        %v1235 = vunpack.c.l.b16 %v1164
        %v1236 = vunpack.c.l.b16 %v1165
        %v1237 = vunpack.c.l.b16 %v1166
        %v1238 = vunpack.c.l.b16 %v1167
        %v1239 = vunpack.c.l.b16 %v1168
        %v1240 = vunpack.c.l.b16 %v1169
        %v1241 = vunpack.c.l.b16 %v1170
        %v1242 = vunpack.c.l.b16 %v1171
        %v1243 = vunpack.c.l.b16 %v1172
        %v1244 = vunpack.c.l.b16 %v1173
        %v1245 = vunpack.c.l.b16 %v1174
        %v1246 = vunpack.c.l.b16 %v1175
        %v1247 = vunpack.c.l.b16 %v1176
        %v1248 = vunpack.c.l.b16 %v1177
        %v1249 = vunpack.c.l.b16 %v1178
        %v1250 = vunpack.c.l.b16 %v1179
        %v1251 = vunpack.c.l.b16 %v1180
        %v1252 = vunpack.c.l.b16 %v1181
        %v1253 = vunpack.c.l.b16 %v1182
        %v1254 = vunpack.c.l.b16 %v1183
        %v1255 = vunpack.c.l.b16 %v1184
        %v1256 = vunpack.c.l.b16 %v1185
        %v1257 = vunpack.c.l.b16 %v1186
        %v1258 = vpack.c.b16 %v1227, %v1226
        %v1259 = vpack.c.b16 %v1229, %v1228
        %v1260 = vpack.c.b16 %v1231, %v1230
        %v1261 = vpack.c.b16 %v1233, %v1232
        %v1262 = vpack.c.b16 %v1235, %v1234
        %v1263 = vpack.c.b16 %v1237, %v1236
        %v1264 = vpack.c.b16 %v1239, %v1238
        %v1265 = vpack.c.b16 %v1241, %v1240
        %v1266 = vpack.c.b16 %v1243, %v1242
        %v1267 = vpack.c.b16 %v1245, %v1244
        %v1268 = vpack.c.b16 %v1247, %v1246
        %v1269 = vpack.c.b16 %v1249, %v1248
        %v1270 = vpack.c.b16 %v1251, %v1250
        %v1271 = vpack.c.b16 %v1253, %v1252
        %v1272 = vpack.c.b16 %v1255, %v1254
        %v1273 = vpack.c.b16 %v1257, %v1256
        %1290 = vmatprep.subr.bf16.mxu0 0
        %1291 = vmatpush1.bf16.msra.mxu0 %v1258
        %1292 = vmatprep.subr.bf16.mxu0 0
        %1293 = vmatpush1.bf16.msra.mxu0 %v1259
        %1294 = vmatprep.subr.bf16.mxu0 0
        %1295 = vmatpush1.bf16.msra.mxu0 %v1260
        %1296 = vmatprep.subr.bf16.mxu0 0
        %1297 = vmatpush1.bf16.msra.mxu0 %v1261
        %1298 = vmatprep.subr.bf16.mxu0 0
        %1299 = vmatpush1.bf16.msra.mxu0 %v1262
        %1300 = vmatprep.subr.bf16.mxu0 0
        %1301 = vmatpush1.bf16.msra.mxu0 %v1263
        %1302 = vmatprep.subr.bf16.mxu0 0
        %1303 = vmatpush1.bf16.msra.mxu0 %v1264
        %1304 = vmatprep.subr.bf16.mxu0 0
        %1305 = vmatpush1.bf16.msra.mxu0 %v1265
        %1306 = vmatprep.subr.bf16.mxu0 0
        %1307 = vmatpush1.bf16.msra.mxu0 %v1266
        %1308 = vmatprep.subr.bf16.mxu0 0
        %1309 = vmatpush1.bf16.msra.mxu0 %v1267
        %1310 = vmatprep.subr.bf16.mxu0 0
        %1311 = vmatpush1.bf16.msra.mxu0 %v1268
        %1312 = vmatprep.subr.bf16.mxu0 0
        %1313 = vmatpush1.bf16.msra.mxu0 %v1269
        %1314 = vmatprep.subr.bf16.mxu0 0
        %1315 = vmatpush1.bf16.msra.mxu0 %v1270
        %1316 = vmatprep.subr.bf16.mxu0 0
        %1317 = vmatpush1.bf16.msra.mxu0 %v1271
        %1318 = vmatprep.subr.bf16.mxu0 0
        %1319 = vmatpush1.bf16.msra.mxu0 %v1272
        %1320 = vmatprep.subr.bf16.mxu0 0
        %1321 = vmatpush1.bf16.msra.mxu0 %v1273
        %1322 = vmatprep.mubr.bf16.mxu0 %v1154
        %1323 = vmatmul.mubr.bf16.gmra.mrb[0].mxu0 %v1153
        %v1324 = vpop.f32.mrb[0].mxu0
        %v1325 = vadd.f32 %v1192, %v1324
        %v1326 = vpop.f32.mrb[0].mxu0
        %v1327 = vpop.f32.mrb[0].mxu0
        %v1328 = vadd.f32 %v1192, %v1327
        %v1329 = vpop.f32.mrb[0].mxu0
        %1330 = vdwg.mxu0
        %v1331 = vtanh.pop %v1325
        %v1332 = vtanh.pop %v1328
        %v1333 = vpack.c.bf16 %v1332, %v1331
        %v1334 = vld [vmem:[%s7] sm:$0xf]
        %v1335 = vld [vmem:[%s7 + $0x4] sm:$0xf]
        %v1336 = vld [vmem:[%s7 + $0x8] sm:$0xf]
        %v1337 = vld [vmem:[%s7 + $0xc] sm:$0xf]
        %v1338 = vld [vmem:[%s7 + $0x10] sm:$0xf]
        %v1339 = vld [vmem:[%s7 + $0x14] sm:$0xf]
        %v1340 = vld [vmem:[%s7 + $0x18] sm:$0xf]
        %v1341 = vld [vmem:[%s7 + $0x1c] sm:$0xf]
        %v1342 = vld [vmem:[%s7 + $0x20] sm:$0xf]
        %v1343 = vld [vmem:[%s7 + $0x24] sm:$0xf]
        %v1344 = vld [vmem:[%s7 + $0x28] sm:$0xf]
        %v1345 = vld [vmem:[%s7 + $0x2c] sm:$0xf]
        %v1346 = vld [vmem:[%s7 + $0x30] sm:$0xf]
        %v1347 = vld [vmem:[%s7 + $0x34] sm:$0xf]
        %v1348 = vld [vmem:[%s7 + $0x38] sm:$0xf]
        %v1349 = vld [vmem:[%s7 + $0x3c] sm:$0xf]
        %v1350 = vld [vmem:[%s8] sm:$0x1]
        %v1352 = vlaneseq
        %v1353 = vshrl.u32 %v1352, 7
        %v1354 = vsub.s32 0, %v1353
        %v1355 = vrot.slane %v1350, %v1354
        %v1373 = vunpack.c.l.b16 %v1334
        %v1374 = vunpack.c.l.b16 %v1335
        %v1375 = vunpack.c.l.b16 %v1336
        %v1376 = vunpack.c.l.b16 %v1337
        %v1377 = vunpack.c.l.b16 %v1338
        %v1378 = vunpack.c.l.b16 %v1339
        %v1379 = vunpack.c.l.b16 %v1340
        %v1380 = vunpack.c.l.b16 %v1341
        %v1381 = vunpack.c.l.b16 %v1342
        %v1382 = vunpack.c.l.b16 %v1343
        %v1383 = vunpack.c.l.b16 %v1344
        %v1384 = vunpack.c.l.b16 %v1345
        %v1385 = vunpack.c.l.b16 %v1346
        %v1386 = vunpack.c.l.b16 %v1347
        %v1387 = vunpack.c.l.b16 %v1348
        %v1388 = vunpack.c.l.b16 %v1349
        %v1389 = vpack.c.b16 %v1374, %v1373
        %v1390 = vpack.c.b16 %v1376, %v1375
        %v1391 = vpack.c.b16 %v1378, %v1377
        %v1392 = vpack.c.b16 %v1380, %v1379
        %v1393 = vpack.c.b16 %v1382, %v1381
        %v1394 = vpack.c.b16 %v1384, %v1383
        %v1395 = vpack.c.b16 %v1386, %v1385
        %v1396 = vpack.c.b16 %v1388, %v1387
        %1405 = vmatprep.subr.bf16.mxu0 0
        %1406 = vmatpush1.bf16.msra.mxu0 %v1389
        %1407 = vmatprep.subr.bf16.mxu0 0
        %1408 = vmatpush1.bf16.msra.mxu0 %v1390
        %1409 = vmatprep.subr.bf16.mxu0 0
        %1410 = vmatpush1.bf16.msra.mxu0 %v1391
        %1411 = vmatprep.subr.bf16.mxu0 0
        %1412 = vmatpush1.bf16.msra.mxu0 %v1392
        %1413 = vmatprep.subr.bf16.mxu0 0
        %1414 = vmatpush1.bf16.msra.mxu0 %v1393
        %1415 = vmatprep.subr.bf16.mxu0 0
        %1416 = vmatpush1.bf16.msra.mxu0 %v1394
        %1417 = vmatprep.subr.bf16.mxu0 0
        %1418 = vmatpush1.bf16.msra.mxu0 %v1395
        %1419 = vmatprep.subr.bf16.mxu0 0
        %1420 = vmatpush1.bf16.msra.mxu0 %v1396
        %1421 = vmatprep.subr.bf16.mxu0 0
        %1422 = vmatpush1.bf16.msra.mxu0 0
        %1423 = vmatprep.subr.bf16.mxu0 0
        %1424 = vmatpush1.bf16.msra.mxu0 0
        %1425 = vmatprep.subr.bf16.mxu0 0
        %1426 = vmatpush1.bf16.msra.mxu0 0
        %1427 = vmatprep.subr.bf16.mxu0 0
        %1428 = vmatpush1.bf16.msra.mxu0 0
        %1429 = vmatprep.subr.bf16.mxu0 0
        %1430 = vmatpush1.bf16.msra.mxu0 0
        %1431 = vmatprep.subr.bf16.mxu0 0
        %1432 = vmatpush1.bf16.msra.mxu0 0
        %1433 = vmatprep.subr.bf16.mxu0 0
        %1434 = vmatpush1.bf16.msra.mxu0 0
        %1435 = vmatprep.subr.bf16.mxu0 0
        %1436 = vmatpush1.bf16.msra.mxu0 0
        %1437 = vmatprep.mubr.bf16.mxu0 0
        %1438 = vmatmul.mubr.bf16.gmra.mrb[0].mxu0 %v1333
        %v1439 = vpop.f32.mrb[0].mxu0
        %v1440 = vadd.f32 %v1355, %v1439
        %v1441 = vpop.f32.mrb[0].mxu0
        %v1442 = vpop.f32.mrb[0].mxu0
        %v1443 = vadd.f32 %v1355, %v1442
        %v1444 = vpop.f32.mrb[0].mxu0
        %1445 = vdwg.mxu0
        %1446 = vst [vmem:[%s356] sm:$0xff] %v1440
        %1447 = vst [vmem:[%s356 + $0x8] sm:$0xff] %v1443
        %s1448 = sand.u32 %s227, 1
        %s1449 = scalar_lea.sflag [#allocation4], %s1448
        %s1450 = sand.u32 %s227, 1
        %s1451 = smul.addr %s1450, 16
        %s1452 = scalar_lea.vmem [#allocation7], %s1451
        // Predicated region
        $region65: #{tpu_custom_call.1} parent=55 // pred_check
          %p1453 = pneg %p237
        $region66: #{tpu_custom_call.1} parent=55 // pred_check_branch
          %1455 = sbr.rel (%p1453) target = $region68
        $region67: #{tpu_custom_call.1} parent=55 // pred_region
          %s1456 = smul.u32 2, %s25
          %s1458 = ssub.s32 256, 256
          %1459 = vsyncadd %s1449, %s1458
          %s1460 = smul.addr %s1456, 128
          %s1461 = scalar_lea.hbm %s9, %s1460
          %s1462 = sshll.u32 %s1452, 4
          %s1463 = int_to_ptr.vmem [resolvable:$true] %s1462
          %1468 = dma.vmem_to_hbm [thread:$0]  %s1463, 256, %s1461, %s1449, 128, 128, 8
        $region68: #{tpu_custom_call.1} parent=55 // pred_fallthru
          _
      $region56: #{tpu_custom_call.1} parent=5 // pred_fallthru
        _
      %p1469 = scmp.le.s32.totalorder 2, %s20
      // Predicated region
      $region69: #{tpu_custom_call.1} parent=5 // pred_check
        %p1470 = pneg %p1469
      $region70: #{tpu_custom_call.1} parent=5 // pred_check_branch
        %1472 = sbr.rel (%p1470) target = $region72
      $region71: #{tpu_custom_call.1} parent=5 // pred_region
        %s1473 = ssub.s32 %s20, 2
        // Predicated region
        $region73: #{tpu_custom_call.1} parent=71 // pred_check
          %p1474 = pneg %p243
        $region74: #{tpu_custom_call.1} parent=71 // pred_check_branch
          %1476 = sbr.rel (%p1474) target = $region76
        $region75: #{tpu_custom_call.1} parent=71 // pred_region
          %s1477 = sand.u32 %s228, 1
          %s1478 = scalar_lea.sflag [#allocation4], %s1477
          %s1479 = sand.u32 %s228, 1
          %s1480 = smul.addr %s1479, 16
          %s1481 = scalar_lea.vmem [#allocation7], %s1480
          %1482 = dma.done %s1478, 256
        $region76: #{tpu_custom_call.1} parent=71 // pred_fallthru
          _
      $region72: #{tpu_custom_call.1} parent=5 // pred_fallthru
        _
    $region6: #{tpu_custom_call.1} parent=1 // loop_footer
      %s24 = sadd.s32 1, %s20
    $region7: #{tpu_custom_call.1} parent=1 // loop_footer_branch
      %19 = sbr.rel target = $region3
    $region8: #{tpu_custom_call.1} parent=1 // loop_exit
      _
    %1483 = vsyncpa [#allocation3], 1
    %s1484 = scalar_lea.sflag [#allocation3], 1
    %1485 = vsyncpa %s1484, 1
    %1486 = vsyncpa [#allocation6], 1
    %1487 = vsyncpa [#allocation4], 1
    %s1488 = scalar_lea.sflag [#allocation4], 1
    %1489 = vsyncpa %s1488, 1

</llo_original>
